<compile_context>
chip_gen: v5e
topology: v5e:2x2
jax: 0.10.0
libtpu: 0.0.40
codegen_flags: <defaults>
</compile_context>

<pallas_src>
import functools

import jax
import jax.numpy as jnp
from jax.experimental import pallas as pl
from jax.experimental.pallas import tpu as pltpu

# SELU constants (match torch.nn.SELU)
_SELU_ALPHA = 1.6732632423543772
_SELU_SCALE = 1.0507009873554805


def _selu(x):
    # jnp.where evaluates exp(x) on the unselected branch for large positive x
    # (-> inf, discarded; no NaN). Do not "fix" this into forms that can NaN.
    return _SELU_SCALE * jnp.where(x > 0, x, _SELU_ALPHA * (jnp.exp(x) - 1.0))


def _round_up(n, m):
    return ((n + m - 1) // m) * m


def _pick_tb(B, cap=512):
    """Batch tile: multiple of 8; >=2 grid steps when B > 8 (dual-TC on v7x)."""
    if B <= 8:
        return 8
    half = -(-B // 2)
    return max(8, min(cap, _round_up(half, 8)))


def _make_kernel(n_layers):
    def kernel(*refs):
        x_ref = refs[0]
        w_refs = refs[1:1 + n_layers]
        b_refs = refs[1 + n_layers:1 + 2 * n_layers]
        o_ref = refs[1 + 2 * n_layers]

        h = x_ref[...]                                   # f32 (tb, lat)
        for l in range(n_layers):                        # static unroll
            # bf16 operands -> full-rate MXU; f32 accumulation for accuracy.
            h = jnp.dot(h.astype(jnp.bfloat16), w_refs[l][...],
                        preferred_element_type=jnp.float32)
            h = h + b_refs[l][...]                       # f32 bias
            if l != n_layers - 1:
                h = _selu(h)                             # dropout = identity (eval mode)
        o_ref[...] = h.astype(o_ref.dtype)
    return kernel


def pack_params(params):
    """params: list of (W (out,in), b (out,)) torch-layout f32 weights.

    Returns per-layer pre-transposed bf16 weights with TRUE fan_in (K) and true
    fan_out (N) for intermediate layers; only the last layer's N is zero-padded
    up to a multiple of 128 so the HBM output store is lane-dense. Biases stay f32.
    """
    n_layers = len(params)
    weights, biases = [], []
    for l, (w, b) in enumerate(params):
        fan_out, fan_in = w.shape
        n_out = _round_up(fan_out, 128) if l == n_layers - 1 else fan_out
        wp = jnp.zeros((fan_in, n_out), jnp.float32).at[:, :fan_out].set(w.T)  # y = x @ W^T
        bp = jnp.zeros((1, n_out), jnp.float32).at[0, :fan_out].set(b)
        weights.append(wp.astype(jnp.bfloat16))
        biases.append(bp)
    return weights, biases


def vae_decoder(x, weights, biases, out_dim, *, tb_cap=512):
    """x: (B, lat) f32. weights[l]: (fan_in_l, n_out_l) bf16. biases[l]: (1, n_out_l) f32."""
    B, lat = x.shape
    n_layers = len(weights)
    n_out_pad = weights[-1].shape[1]

    tb = _pick_tb(B, tb_cap)
    b_pad = _round_up(B, tb)
    if b_pad != B:
        x = jnp.pad(x, ((0, b_pad - B), (0, 0)))         # cheap row-pad only

    in_specs = [pl.BlockSpec((tb, lat), lambda i: (i, 0))]          # x tile over batch
    in_specs += [pl.BlockSpec(w.shape, lambda i: (0, 0)) for w in weights]   # resident
    in_specs += [pl.BlockSpec(b.shape, lambda i: (0, 0)) for b in biases]    # resident

    y_p = pl.pallas_call(
        _make_kernel(n_layers),
        out_shape=jax.ShapeDtypeStruct((b_pad, n_out_pad), x.dtype),
        grid_spec=pltpu.PrefetchScalarGridSpec(
            num_scalar_prefetch=0,
            grid=(b_pad // tb,),
            in_specs=in_specs,
            out_specs=pl.BlockSpec((tb, n_out_pad), lambda i: (i, 0)),
        ),
        compiler_params=pltpu.CompilerParams(dimension_semantics=("parallel",)),
    )(x, *weights, *biases)

    # Trailing slice; a downstream consumer may instead take the padded (b_pad, 128)
    # slab directly to avoid this extra copy pass.
    return y_p[:B, :out_dim]


def make_params(key, dims):
    """dims = [in0, out0=in1, out1=in2, out2]; returns list of (W (out,in), b (out,)) like torch."""
    params = []
    for i in range(len(dims) - 1):
        fan_in, fan_out = dims[i], dims[i + 1]
        key, kw, kb = jax.random.split(key, 3)
        bound = 1.0 / (fan_in ** 0.5)  # torch nn.Linear default init range
        w = jax.random.uniform(kw, (fan_out, fan_in), jnp.float32, -bound, bound)
        b = jax.random.uniform(kb, (fan_out,), jnp.float32, -bound, bound)
        params.append((w, b))
    return params


def reference(x, params):
    h = x
    for l, (w, b) in enumerate(params):
        h = h @ w.T + b
        if l != len(params) - 1:
            h = _selu(h)
    return h


if __name__ == "__main__":
    # hparam: N_LAYERS=3, AE_F_ENCODING=2, DROPOUT_P=0.1, lat_=32, out_=64
    LAT, F, OUT, B = 32, 2, 64, 8
    dims = [LAT, LAT * F, LAT * F * F, OUT]              # 32 -> 64 -> 128 -> 64

    key = jax.random.PRNGKey(0)
    key, kx = jax.random.split(key)
    x = jax.random.normal(kx, (B, LAT), jnp.float32)
    params = make_params(key, dims)
    weights, biases = pack_params(params)

    fwd = jax.jit(functools.partial(vae_decoder, out_dim=OUT))
    y = fwd(x, weights, biases)
    y = jax.block_until_ready(y)

    y_ref = reference(x, params)                         # f32 reference
    assert y.shape == (B, OUT), y.shape
    # bf16 weights/activations with f32 accumulation -> loosened tolerance vs f32 ref.
    assert jnp.allclose(y, y_ref, atol=3e-2, rtol=3e-2), float(jnp.max(jnp.abs(y - y_ref)))
    print("KERNEL_OK")
</pallas_src>

<mosaic_0001>
module attributes {stable_mosaic.version = 11 : i64} {
  func.func @kernel(%arg0: i32, %arg1: memref<8x32xf32, #tpu.memory_space<vmem>>, %arg2: memref<32x64xbf16, #tpu.memory_space<vmem>>, %arg3: memref<64x128xbf16, #tpu.memory_space<vmem>>, %arg4: memref<128x128xbf16, #tpu.memory_space<vmem>>, %arg5: memref<1x64xf32, #tpu.memory_space<vmem>>, %arg6: memref<1x128xf32, #tpu.memory_space<vmem>>, %arg7: memref<1x128xf32, #tpu.memory_space<vmem>>, %arg8: memref<8x128xf32, #tpu.memory_space<vmem>>) attributes {dimension_semantics = [#tpu.dimension_semantics<parallel>], iteration_bounds = array<i64: 1>, scalar_prefetch = 0 : i64, scratch_operands = 0 : i64, tpu.core_type = #tpu.core_type<tc>, window_params = [{transform_indices = @transform_0, window_bounds = array<i64: 8, 32>}, {pipeline_mode = #tpu.pipeline_mode<synchronous>, transform_indices = @transform_1, window_bounds = array<i64: 32, 64>}, {pipeline_mode = #tpu.pipeline_mode<synchronous>, transform_indices = @transform_2, window_bounds = array<i64: 64, 128>}, {pipeline_mode = #tpu.pipeline_mode<synchronous>, transform_indices = @transform_3, window_bounds = array<i64: 128, 128>}, {pipeline_mode = #tpu.pipeline_mode<synchronous>, transform_indices = @transform_4, window_bounds = array<i64: 1, 64>}, {pipeline_mode = #tpu.pipeline_mode<synchronous>, transform_indices = @transform_5, window_bounds = array<i64: 1, 128>}, {pipeline_mode = #tpu.pipeline_mode<synchronous>, transform_indices = @transform_6, window_bounds = array<i64: 1, 128>}, {transform_indices = @transform_7, window_bounds = array<i64: 8, 128>}]} {
    %c0 = arith.constant 0 : index
    %c0_0 = arith.constant 0 : index
    %0 = vector.load %arg1[%c0, %c0_0] : memref<8x32xf32, #tpu.memory_space<vmem>>, vector<8x32xf32>
    %1 = arith.truncf %0 : vector<8x32xf32> to vector<8x32xbf16>
    %c0_1 = arith.constant 0 : index
    %c0_2 = arith.constant 0 : index
    %2 = vector.load %arg2[%c0_1, %c0_2] : memref<32x64xbf16, #tpu.memory_space<vmem>>, vector<32x64xbf16>
    %cst = arith.constant dense<0.000000e+00> : vector<8x64xf32>
    %3 = tpu.matmul %1, %2, %cst {dimension_numbers = #tpu.dot_dimension_numbers<[1], [0], [0], [1], [0, 0, 1, 1], [], []>} : vector<8x32xbf16>, vector<32x64xbf16>, vector<8x64xf32> -> vector<8x64xf32>
    %c0_3 = arith.constant 0 : index
    %c0_4 = arith.constant 0 : index
    %4 = vector.load %arg5[%c0_3, %c0_4] : memref<1x64xf32, #tpu.memory_space<vmem>>, vector<1x64xf32>
    %5 = vector.broadcast %4 : vector<1x64xf32> to vector<8x64xf32>
    %6 = arith.addf %3, %5 : vector<8x64xf32>
    %cst_5 = arith.constant 0.000000e+00 : f32
    %7 = vector.broadcast %cst_5 : f32 to vector<8x64xf32>
    %8 = arith.cmpf ogt, %6, %7 : vector<8x64xf32>
    %9 = math.exp %6 : vector<8x64xf32>
    %cst_6 = arith.constant 1.000000e+00 : f32
    %10 = vector.broadcast %cst_6 : f32 to vector<8x64xf32>
    %11 = arith.subf %9, %10 : vector<8x64xf32>
    %cst_7 = arith.constant 1.67326319 : f32
    %12 = vector.broadcast %cst_7 : f32 to vector<8x64xf32>
    %13 = arith.mulf %12, %11 : vector<8x64xf32>
    %14 = arith.select %8, %6, %13 : vector<8x64xi1>, vector<8x64xf32>
    %cst_8 = arith.constant 1.05070102 : f32
    %15 = vector.broadcast %cst_8 : f32 to vector<8x64xf32>
    %16 = arith.mulf %15, %14 : vector<8x64xf32>
    %17 = arith.truncf %16 : vector<8x64xf32> to vector<8x64xbf16>
    %c0_9 = arith.constant 0 : index
    %c0_10 = arith.constant 0 : index
    %18 = vector.load %arg3[%c0_9, %c0_10] : memref<64x128xbf16, #tpu.memory_space<vmem>>, vector<64x128xbf16>
    %cst_11 = arith.constant dense<0.000000e+00> : vector<8x128xf32>
    %19 = tpu.matmul %17, %18, %cst_11 {dimension_numbers = #tpu.dot_dimension_numbers<[1], [0], [0], [1], [0, 0, 1, 1], [], []>} : vector<8x64xbf16>, vector<64x128xbf16>, vector<8x128xf32> -> vector<8x128xf32>
    %c0_12 = arith.constant 0 : index
    %c0_13 = arith.constant 0 : index
    %20 = vector.load %arg6[%c0_12, %c0_13] : memref<1x128xf32, #tpu.memory_space<vmem>>, vector<1x128xf32>
    %21 = vector.broadcast %20 : vector<1x128xf32> to vector<8x128xf32>
    %22 = arith.addf %19, %21 : vector<8x128xf32>
    %cst_14 = arith.constant 0.000000e+00 : f32
    %23 = vector.broadcast %cst_14 : f32 to vector<8x128xf32>
    %24 = arith.cmpf ogt, %22, %23 : vector<8x128xf32>
    %25 = math.exp %22 : vector<8x128xf32>
    %cst_15 = arith.constant 1.000000e+00 : f32
    %26 = vector.broadcast %cst_15 : f32 to vector<8x128xf32>
    %27 = arith.subf %25, %26 : vector<8x128xf32>
    %cst_16 = arith.constant 1.67326319 : f32
    %28 = vector.broadcast %cst_16 : f32 to vector<8x128xf32>
    %29 = arith.mulf %28, %27 : vector<8x128xf32>
    %30 = arith.select %24, %22, %29 : vector<8x128xi1>, vector<8x128xf32>
    %cst_17 = arith.constant 1.05070102 : f32
    %31 = vector.broadcast %cst_17 : f32 to vector<8x128xf32>
    %32 = arith.mulf %31, %30 : vector<8x128xf32>
    %33 = arith.truncf %32 : vector<8x128xf32> to vector<8x128xbf16>
    %c0_18 = arith.constant 0 : index
    %c0_19 = arith.constant 0 : index
    %34 = vector.load %arg4[%c0_18, %c0_19] : memref<128x128xbf16, #tpu.memory_space<vmem>>, vector<128x128xbf16>
    %cst_20 = arith.constant dense<0.000000e+00> : vector<8x128xf32>
    %35 = tpu.matmul %33, %34, %cst_20 {dimension_numbers = #tpu.dot_dimension_numbers<[1], [0], [0], [1], [0, 0, 1, 1], [], []>} : vector<8x128xbf16>, vector<128x128xbf16>, vector<8x128xf32> -> vector<8x128xf32>
    %c0_21 = arith.constant 0 : index
    %c0_22 = arith.constant 0 : index
    %36 = vector.load %arg7[%c0_21, %c0_22] : memref<1x128xf32, #tpu.memory_space<vmem>>, vector<1x128xf32>
    %37 = vector.broadcast %36 : vector<1x128xf32> to vector<8x128xf32>
    %38 = arith.addf %35, %37 : vector<8x128xf32>
    %c0_23 = arith.constant 0 : index
    %c0_24 = arith.constant 0 : index
    %39 = vector.load %arg8[%c0_23, %c0_24] : memref<8x128xf32, #tpu.memory_space<vmem>>, vector<8x128xf32>
    tpu.vector_store %arg8[%c0_23, %c0_24], %38 {strides = array<i32>} : memref<8x128xf32, #tpu.memory_space<vmem>>, vector<8x128xf32>,
    return
  }
  func.func @transform_0(%arg0: i32) -> (i32, i32) {
    %c0_i32 = arith.constant 0 : i32
    %c0_i32_0 = arith.constant 0 : i32
    return %arg0, %c0_i32 : i32, i32
  }
  func.func @transform_1(%arg0: i32) -> (i32, i32) {
    %c0_i32 = arith.constant 0 : i32
    %c0_i32_0 = arith.constant 0 : i32
    %c0_i32_1 = arith.constant 0 : i32
    return %c0_i32, %c0_i32_0 : i32, i32
  }
  func.func @transform_2(%arg0: i32) -> (i32, i32) {
    %c0_i32 = arith.constant 0 : i32
    %c0_i32_0 = arith.constant 0 : i32
    %c0_i32_1 = arith.constant 0 : i32
    return %c0_i32, %c0_i32_0 : i32, i32
  }
  func.func @transform_3(%arg0: i32) -> (i32, i32) {
    %c0_i32 = arith.constant 0 : i32
    %c0_i32_0 = arith.constant 0 : i32
    %c0_i32_1 = arith.constant 0 : i32
    return %c0_i32, %c0_i32_0 : i32, i32
  }
  func.func @transform_4(%arg0: i32) -> (i32, i32) {
    %c0_i32 = arith.constant 0 : i32
    %c0_i32_0 = arith.constant 0 : i32
    %c0_i32_1 = arith.constant 0 : i32
    return %c0_i32, %c0_i32_0 : i32, i32
  }
  func.func @transform_5(%arg0: i32) -> (i32, i32) {
    %c0_i32 = arith.constant 0 : i32
    %c0_i32_0 = arith.constant 0 : i32
    %c0_i32_1 = arith.constant 0 : i32
    return %c0_i32, %c0_i32_0 : i32, i32
  }
  func.func @transform_6(%arg0: i32) -> (i32, i32) {
    %c0_i32 = arith.constant 0 : i32
    %c0_i32_0 = arith.constant 0 : i32
    %c0_i32_1 = arith.constant 0 : i32
    return %c0_i32, %c0_i32_0 : i32, i32
  }
  func.func @transform_7(%arg0: i32) -> (i32, i32) {
    %c0_i32 = arith.constant 0 : i32
    %c0_i32_0 = arith.constant 0 : i32
    return %arg0, %c0_i32 : i32, i32
  }
}

</mosaic_0001>

<llo_original>
// kernel: vae_decoder.1
$region0: #{vae_decoder.1}
  #allocation0 [shape = 'u32[]', space=smem, size = 0x4, offset = 0x4, fixed_abs, tag = 'smem constant byte address 0x4 - core index']
  #allocation1 [shape = 'u32[72,128]{1,0:T(1,128)}', space=vmem, size = 0x9000, scoped, tag = 'internal scratch']
  %s0 = inlined_call_operand.hbm [shape: f32[8,32], index: 0, kind: input, shape index: {}]
  %s1 = inlined_call_operand.hbm [shape: bf16[32,64], index: 1, kind: input, shape index: {}]
  %s2 = inlined_call_operand.hbm [shape: bf16[64,128], index: 2, kind: input, shape index: {}]
  %s3 = inlined_call_operand.hbm [shape: bf16[128,128], index: 3, kind: input, shape index: {}]
  %s4 = inlined_call_operand.vmem [shape: f32[1,64], index: 4, kind: input, shape index: {}]
  %s5 = inlined_call_operand.vmem [shape: f32[1,128], index: 5, kind: input, shape index: {}]
  %s6 = inlined_call_operand.vmem [shape: f32[1,128], index: 6, kind: input, shape index: {}]
  %s7 = inlined_call_operand.hbm [shape: f32[8,128], index: 7, kind: output, shape index: {}]
  %s8 = sld [smem:[#allocation0]]
  $region54: #{vae_decoder.1} parent=0
    _
  %s10 = ssub.s32 1, %s8
  %s11 = scalar_select 0, %s10, %s8
  $region1: #{vae_decoder.1} parent=0
    #allocation2 [shape = 'u8[4096]{0}', space=vmem, size = 0x1000, scoped, tag = 'input window, operand 0, single buffered']
    #allocation3 [shape = 's32[1]{0}', space=sflag, size = 0x4, scoped, tag = 'scoped memory for vae_decoder.1']
    #allocation4 [shape = 's32[1]{0}', space=sflag, size = 0x4, scoped, tag = 'scoped memory for vae_decoder.1']
    #allocation5 [shape = 'u8[8192]{0}', space=vmem, size = 0x2000, scoped, tag = 'input window, operand 1, single buffered']
    #allocation6 [shape = 's32[1]{0}', space=sflag, size = 0x4, scoped, tag = 'scoped memory for vae_decoder.1']
    #allocation7 [shape = 'u8[16384]{0}', space=vmem, size = 0x4000, scoped, tag = 'input window, operand 2, single buffered']
    #allocation8 [shape = 'u8[32768]{0}', space=vmem, size = 0x8000, scoped, tag = 'input window, operand 3, single buffered']
    #allocation9 [shape = 's32[1]{0}', space=sflag, size = 0x4, scoped, tag = 'scoped memory for vae_decoder.1']
    #allocation10 [shape = 'u8[4096]{0}', space=vmem, size = 0x1000, scoped, tag = 'output window, operand 0, single buffered']
    %12 = vsyncpa [#allocation3], 0
    %13 = vsyncpa [#allocation6], 0
    %14 = vsyncpa [#allocation9], 0
    %15 = vsyncpa [#allocation4], 0
    // Predicated region
    $region2: #{vae_decoder.1} parent=1 // pred_check
      _
    $region3: #{vae_decoder.1} parent=1 // pred_check_branch
      %17 = sbr.rel (0) target = $region5
    $region4: #{vae_decoder.1} parent=1 // pred_region
      %19 = vsyncadd [#allocation3], 0
      %s21 = sshll.u32 %s0, 4
      %s22 = int_to_ptr.hbm [resolvable:$true] %s21
      %s23 = sshll.u32 [#allocation2], 4
      %s24 = int_to_ptr.vmem [resolvable:$true] %s23
      %26 = dma.hbm_to_vmem [thread:$0]  %s22, 128, %s24, [#allocation3]
    $region5: #{vae_decoder.1} parent=1 // pred_fallthru
      _
    // Predicated region
    $region6: #{vae_decoder.1} parent=1 // pred_check
      _
    $region7: #{vae_decoder.1} parent=1 // pred_check_branch
      %28 = sbr.rel (0) target = $region9
    $region8: #{vae_decoder.1} parent=1 // pred_region
      %30 = vsyncadd [#allocation6], 0
      %s31 = sshll.u32 %s1, 4
      %s32 = int_to_ptr.hbm [resolvable:$true] %s31
      %s33 = sshll.u32 [#allocation5], 4
      %s34 = int_to_ptr.vmem [resolvable:$true] %s33
      %39 = dma.hbm_to_vmem [thread:$0]  %s32, 256, %s34, [#allocation6], 64, 64, 4
    $region9: #{vae_decoder.1} parent=1 // pred_fallthru
      _
    // Predicated region
    $region10: #{vae_decoder.1} parent=1 // pred_check
      _
    $region11: #{vae_decoder.1} parent=1 // pred_check_branch
      %41 = sbr.rel (0) target = $region13
    $region12: #{vae_decoder.1} parent=1 // pred_region
      %43 = vsyncadd [#allocation6], 0
      %s44 = sshll.u32 %s2, 4
      %s45 = int_to_ptr.hbm [resolvable:$true] %s44
      %s46 = sshll.u32 [#allocation7], 4
      %s47 = int_to_ptr.vmem [resolvable:$true] %s46
      %52 = dma.hbm_to_vmem [thread:$0]  %s45, 512, %s47, [#allocation6], 64, 64, 4
    $region13: #{vae_decoder.1} parent=1 // pred_fallthru
      _
    // Predicated region
    $region14: #{vae_decoder.1} parent=1 // pred_check
      _
    $region15: #{vae_decoder.1} parent=1 // pred_check_branch
      %54 = sbr.rel (0) target = $region17
    $region16: #{vae_decoder.1} parent=1 // pred_region
      %56 = vsyncadd [#allocation9], 0
      %s57 = sshll.u32 %s3, 4
      %s58 = int_to_ptr.hbm [resolvable:$true] %s57
      %s59 = sshll.u32 [#allocation8], 4
      %s60 = int_to_ptr.vmem [resolvable:$true] %s59
      %65 = dma.hbm_to_vmem [thread:$0]  %s58, 1024, %s60, [#allocation9], 64, 64, 4
    $region17: #{vae_decoder.1} parent=1 // pred_fallthru
      _
    // Predicated region
    $region18: #{vae_decoder.1} parent=1 // pred_check
      _
    $region19: #{vae_decoder.1} parent=1 // pred_check_branch
      %67 = sbr.rel (0) target = $region21
    $region20: #{vae_decoder.1} parent=1 // pred_region
      _
    $region21: #{vae_decoder.1} parent=1 // pred_fallthru
      _
    // Predicated region
    $region22: #{vae_decoder.1} parent=1 // pred_check
      _
    $region23: #{vae_decoder.1} parent=1 // pred_check_branch
      %69 = sbr.rel (0) target = $region25
    $region24: #{vae_decoder.1} parent=1 // pred_region
      _
    $region25: #{vae_decoder.1} parent=1 // pred_fallthru
      _
    // Predicated region
    $region26: #{vae_decoder.1} parent=1 // pred_check
      _
    $region27: #{vae_decoder.1} parent=1 // pred_check_branch
      %71 = sbr.rel (0) target = $region29
    $region28: #{vae_decoder.1} parent=1 // pred_region
      _
    $region29: #{vae_decoder.1} parent=1 // pred_fallthru
      _
    // Predicated region
    $region30: #{vae_decoder.1} parent=1 // pred_check
      _
    $region31: #{vae_decoder.1} parent=1 // pred_check_branch
      %73 = sbr.rel (0) target = $region33
    $region32: #{vae_decoder.1} parent=1 // pred_region
      %75 = dma.done [#allocation3], 128
    $region33: #{vae_decoder.1} parent=1 // pred_fallthru
      _
    // Predicated region
    $region34: #{vae_decoder.1} parent=1 // pred_check
      _
    $region35: #{vae_decoder.1} parent=1 // pred_check_branch
      %77 = sbr.rel (0) target = $region37
    $region36: #{vae_decoder.1} parent=1 // pred_region
      %79 = dma.done [#allocation6], 256
    $region37: #{vae_decoder.1} parent=1 // pred_fallthru
      _
    // Predicated region
    $region38: #{vae_decoder.1} parent=1 // pred_check
      _
    $region39: #{vae_decoder.1} parent=1 // pred_check_branch
      %81 = sbr.rel (0) target = $region41
    $region40: #{vae_decoder.1} parent=1 // pred_region
      %83 = dma.done [#allocation6], 512
    $region41: #{vae_decoder.1} parent=1 // pred_fallthru
      _
    // Predicated region
    $region42: #{vae_decoder.1} parent=1 // pred_check
      _
    $region43: #{vae_decoder.1} parent=1 // pred_check_branch
      %85 = sbr.rel (0) target = $region45
    $region44: #{vae_decoder.1} parent=1 // pred_region
      %87 = dma.done [#allocation9], 1024
    $region45: #{vae_decoder.1} parent=1 // pred_fallthru
      _
    %v89 = vld [vmem:[#allocation2] sm:$0xff]
    %v90 = vpack.c.bf16 %v89, %v89
    %v91 = vld [vmem:[#allocation5] sm:$0xf]
    %v92 = vld [vmem:[#allocation5 + $0x4] sm:$0xf]
    %v93 = vld [vmem:[#allocation5 + $0x8] sm:$0xf]
    %v94 = vld [vmem:[#allocation5 + $0xc] sm:$0xf]
    %v95 = vld [vmem:[%s4] sm:$0x1]
    %v97 = vperm.slane %v95, 0
    %v103 = vunpack.c.l.b16 %v91
    %v104 = vunpack.c.l.b16 %v92
    %v105 = vunpack.c.l.b16 %v93
    %v106 = vunpack.c.l.b16 %v94
    %v107 = vpack.c.b16 %v104, %v103
    %v108 = vpack.c.b16 %v106, %v105
    %vm111 = vcmask 261120
    %v113 = vsel %vm111, %v90, 0
    %115 = vmatpush.bf16.msra.mxu0 0
    %116 = vmatpush.bf16.msra.mxu0 0
    %117 = vmatpush.bf16.msra.mxu0 0
    %118 = vmatpush.bf16.msra.mxu0 0
    %119 = vmatpush.bf16.msra.mxu0 0
    %120 = vmatpush.bf16.msra.mxu0 0
    %121 = vmatpush.bf16.msra.mxu0 %v108
    %122 = vmatpush.bf16.msra.mxu0 %v107
    %123 = vmatmul.bf16.gmra.mxu0 %v113
    %v124 = vpop.f32.mrf.mxu0
    %v125 = vadd.f32 %v97, %v124
    %v126 = vpop.f32.mrf.mxu0
    %127 = vdwg.mxu0
    %vm128 = vcmp.gt.f32.partialorder %v125, 0.0
    %v129 = vmul.f32 %v125, 1.442695
    %v130 = vpow.pop %v129
    %v131 = vsub.f32 %v130, 1.0
    %v132 = vmul.f32 %v131, 1.6732632
    %v133 = vsel %vm128, %v125, %v132
    %v134 = vmul.f32 %v133, 1.050701
    %v135 = vpack.c.bf16 %v134, %v134
    %v136 = vld [vmem:[#allocation7] sm:$0xf]
    %v137 = vld [vmem:[#allocation7 + $0x4] sm:$0xf]
    %v138 = vld [vmem:[#allocation7 + $0x8] sm:$0xf]
    %v139 = vld [vmem:[#allocation7 + $0xc] sm:$0xf]
    %v140 = vld [vmem:[#allocation7 + $0x10] sm:$0xf]
    %v141 = vld [vmem:[#allocation7 + $0x14] sm:$0xf]
    %v142 = vld [vmem:[#allocation7 + $0x18] sm:$0xf]
    %v143 = vld [vmem:[#allocation7 + $0x1c] sm:$0xf]
    %v144 = vld [vmem:[%s5] sm:$0x1]
    %v146 = vperm.slane %v144, 0
    %v156 = vunpack.c.l.b16 %v136
    %v157 = vunpack.c.l.b16 %v137
    %v158 = vunpack.c.l.b16 %v138
    %v159 = vunpack.c.l.b16 %v139
    %v160 = vunpack.c.l.b16 %v140
    %v161 = vunpack.c.l.b16 %v141
    %v162 = vunpack.c.l.b16 %v142
    %v163 = vunpack.c.l.b16 %v143
    %v164 = vpack.c.b16 %v157, %v156
    %v165 = vpack.c.b16 %v159, %v158
    %v166 = vpack.c.b16 %v161, %v160
    %v167 = vpack.c.b16 %v163, %v162
    %vm172 = vcmask 523264
    %v174 = vsel %vm172, %v135, 0
    %176 = vmatpush.bf16.msra.mxu0 0
    %177 = vmatpush.bf16.msra.mxu0 0
    %178 = vmatpush.bf16.msra.mxu0 0
    %179 = vmatpush.bf16.msra.mxu0 0
    %180 = vmatpush.bf16.msra.mxu0 %v167
    %181 = vmatpush.bf16.msra.mxu0 %v166
    %182 = vmatpush.bf16.msra.mxu0 %v165
    %183 = vmatpush.bf16.msra.mxu0 %v164
    %184 = vmatmul.bf16.gmra.mxu0 %v174
    %v185 = vpop.f32.mrf.mxu0
    %v186 = vadd.f32 %v146, %v185
    %v187 = vpop.f32.mrf.mxu0
    %188 = vdwg.mxu0
    %vm189 = vcmp.gt.f32.partialorder %v186, 0.0
    %v190 = vmul.f32 %v186, 1.442695
    %v191 = vpow.pop %v190
    %v192 = vsub.f32 %v191, 1.0
    %v193 = vmul.f32 %v192, 1.6732632
    %v194 = vsel %vm189, %v186, %v193
    %v195 = vmul.f32 %v194, 1.050701
    %v196 = vpack.c.bf16 %v195, %v195
    %v197 = vld [vmem:[#allocation8] sm:$0xf]
    %v198 = vld [vmem:[#allocation8 + $0x4] sm:$0xf]
    %v199 = vld [vmem:[#allocation8 + $0x8] sm:$0xf]
    %v200 = vld [vmem:[#allocation8 + $0xc] sm:$0xf]
    %v201 = vld [vmem:[#allocation8 + $0x10] sm:$0xf]
    %v202 = vld [vmem:[#allocation8 + $0x14] sm:$0xf]
    %v203 = vld [vmem:[#allocation8 + $0x18] sm:$0xf]
    %v204 = vld [vmem:[#allocation8 + $0x1c] sm:$0xf]
    %v205 = vld [vmem:[#allocation8 + $0x20] sm:$0xf]
    %v206 = vld [vmem:[#allocation8 + $0x24] sm:$0xf]
    %v207 = vld [vmem:[#allocation8 + $0x28] sm:$0xf]
    %v208 = vld [vmem:[#allocation8 + $0x2c] sm:$0xf]
    %v209 = vld [vmem:[#allocation8 + $0x30] sm:$0xf]
    %v210 = vld [vmem:[#allocation8 + $0x34] sm:$0xf]
    %v211 = vld [vmem:[#allocation8 + $0x38] sm:$0xf]
    %v212 = vld [vmem:[#allocation8 + $0x3c] sm:$0xf]
    %v213 = vld [vmem:[%s6] sm:$0x1]
    %v215 = vperm.slane %v213, 0
    %v233 = vunpack.c.l.b16 %v197
    %v234 = vunpack.c.l.b16 %v198
    %v235 = vunpack.c.l.b16 %v199
    %v236 = vunpack.c.l.b16 %v200
    %v237 = vunpack.c.l.b16 %v201
    %v238 = vunpack.c.l.b16 %v202
    %v239 = vunpack.c.l.b16 %v203
    %v240 = vunpack.c.l.b16 %v204
    %v241 = vunpack.c.l.b16 %v205
    %v242 = vunpack.c.l.b16 %v206
    %v243 = vunpack.c.l.b16 %v207
    %v244 = vunpack.c.l.b16 %v208
    %v245 = vunpack.c.l.b16 %v209
    %v246 = vunpack.c.l.b16 %v210
    %v247 = vunpack.c.l.b16 %v211
    %v248 = vunpack.c.l.b16 %v212
    %v249 = vpack.c.b16 %v234, %v233
    %v250 = vpack.c.b16 %v236, %v235
    %v251 = vpack.c.b16 %v238, %v237
    %v252 = vpack.c.b16 %v240, %v239
    %v253 = vpack.c.b16 %v242, %v241
    %v254 = vpack.c.b16 %v244, %v243
    %v255 = vpack.c.b16 %v246, %v245
    %v256 = vpack.c.b16 %v248, %v247
    %265 = vmatpush.bf16.msra.mxu0 %v256
    %266 = vmatpush.bf16.msra.mxu0 %v255
    %267 = vmatpush.bf16.msra.mxu0 %v254
    %268 = vmatpush.bf16.msra.mxu0 %v253
    %269 = vmatpush.bf16.msra.mxu0 %v252
    %270 = vmatpush.bf16.msra.mxu0 %v251
    %271 = vmatpush.bf16.msra.mxu0 %v250
    %272 = vmatpush.bf16.msra.mxu0 %v249
    %273 = vmatmul.bf16.gmra.mxu0 %v196
    %v274 = vpop.f32.mrf.mxu0
    %v275 = vadd.f32 %v215, %v274
    %v276 = vpop.f32.mrf.mxu0
    %277 = vdwg.mxu0
    %278 = vst [vmem:[#allocation10] sm:$0xff] %v275
    // Predicated region
    $region46: #{vae_decoder.1} parent=1 // pred_check
      _
    $region47: #{vae_decoder.1} parent=1 // pred_check_branch
      %280 = sbr.rel (0) target = $region49
    $region48: #{vae_decoder.1} parent=1 // pred_region
      %282 = vsyncadd [#allocation4], 0
      %s284 = sshll.u32 [#allocation10], 4
      %s285 = int_to_ptr.vmem [resolvable:$true] %s284
      %s286 = sshll.u32 %s7, 4
      %s287 = int_to_ptr.hbm [resolvable:$true] %s286
      %289 = dma.vmem_to_hbm [thread:$0]  %s285, 128, %s287, [#allocation4]
    $region49: #{vae_decoder.1} parent=1 // pred_fallthru
      _
    // Predicated region
    $region50: #{vae_decoder.1} parent=1 // pred_check
      _
    $region51: #{vae_decoder.1} parent=1 // pred_check_branch
      %291 = sbr.rel (0) target = $region53
    $region52: #{vae_decoder.1} parent=1 // pred_region
      %293 = dma.done [#allocation4], 128
    $region53: #{vae_decoder.1} parent=1 // pred_fallthru
      _
    %294 = vsyncpa [#allocation3], 1
    %295 = vsyncpa [#allocation6], 1
    %296 = vsyncpa [#allocation9], 1
    %297 = vsyncpa [#allocation4], 1

</llo_original>
